<compile_context>
chip_gen: v5e
topology: v5e:2x2
jax: 0.10.0
libtpu: 0.0.40
codegen_flags: <defaults>
</compile_context>

<pallas_src>
import functools

import jax
import jax.numpy as jnp
from jax.experimental import pallas as pl
from jax.experimental.pallas import tpu as pltpu


def _round_up(x, m):
    return (x + m - 1) // m * m


def _pick_tm(M, cap=512):
    """Row tile for GEMMs: full block if small, else a nice divisor (no padding
    needed anywhere in this model)."""
    if M <= cap:
        return M, M
    Mp = _round_up(M, 8)
    for tm in range(cap, 7, -8):
        if Mp % tm == 0:
            return tm, Mp
    return 256, _round_up(Mp, 256)


def _pick_tn(Np, cap=512):
    for tn in (cap, 384, 256, 128):
        if tn <= Np and Np % tn == 0:
            return tn
    return Np


# --------------------- fused matmul + bias + activation ----------------------
def _matmul_bias_act_kernel(x_ref, w_ref, b_ref, o_ref, *, activation):
    y = jnp.dot(x_ref[...], w_ref[...], preferred_element_type=jnp.float32)
    y = y + b_ref[...]
    if activation == "relu":
        y = jnp.maximum(y, 0.0)
    elif activation == "tanh":
        y = jnp.tanh(y)
    o_ref[...] = y.astype(o_ref.dtype)


def matmul_bias_act(x, w_bf16, b_f32, activation="none"):
    """y = act(x @ w + b).  x:(M,K) float; w:(K,Np) bf16 with Np%128==0
    (pre-padded at prepare time); b:(1,Np) f32.  Returns (M,Np) f32."""
    M, K = x.shape
    K2, Np = w_bf16.shape
    assert K == K2 and Np % 128 == 0 and b_f32.shape == (1, Np)
    tm, Mp = _pick_tm(M)
    tn = _pick_tn(Np)
    xb = x.astype(jnp.bfloat16)
    if Mp != M:
        xb = jnp.pad(xb, ((0, Mp - M), (0, 0)))
    grid = (Mp // tm, Np // tn)
    out = pl.pallas_call(
        functools.partial(_matmul_bias_act_kernel, activation=activation),
        out_shape=jax.ShapeDtypeStruct((Mp, Np), jnp.float32),
        grid_spec=pltpu.PrefetchScalarGridSpec(
            num_scalar_prefetch=0,
            grid=grid,
            in_specs=[
                pl.BlockSpec((tm, K), lambda i, j: (i, 0)),   # K in one block
                pl.BlockSpec((K, tn), lambda i, j: (0, j)),
                pl.BlockSpec((1, tn), lambda i, j: (0, j)),
            ],
            out_specs=pl.BlockSpec((tm, tn), lambda i, j: (i, j)),
        ),
        compiler_params=pltpu.CompilerParams(
            dimension_semantics=("parallel", "parallel"),
            vmem_limit_bytes=32 * 1024 * 1024),
    )(xb, w_bf16, b_f32)
    if Mp != M:
        out = out[:M]
    return out


# ------------------------------- batch norm ----------------------------------
# TODO(synk): training-mode batch statistics only (matches nn.BatchNorm in
# train()); running-stats tracking / eval mode is not implemented.
def _bn_kernel(x_ref, g_ref, b_ref, o_ref, sum_ref, sq_ref, *, eps, inv_m, fold):
    p = pl.program_id(0)   # 0: statistics pass, 1: normalize pass
    i = pl.program_id(1)   # row-block index

    @pl.when((p == 0) & (i == 0))
    def _():
        sum_ref[...] = jnp.zeros_like(sum_ref)
        sq_ref[...] = jnp.zeros_like(sq_ref)

    @pl.when(p == 0)
    def _():
        x = x_ref[...]
        sum_ref[...] += jnp.sum(x, axis=0, keepdims=True)
        sq_ref[...] += jnp.sum(x * x, axis=0, keepdims=True)

    @pl.when(p == 1)
    def _():
        s = sum_ref[...]
        q = sq_ref[...]
        if fold:  # channels were folded 2-into-128 lanes: combine the halves
            half = s.shape[-1] // 2
            s = s + pltpu.roll(s, half, axis=1)
            q = q + pltpu.roll(q, half, axis=1)
        mean = s * inv_m
        var = jnp.maximum(q * inv_m - mean * mean, 0.0)
        scale = jax.lax.rsqrt(var + eps) * g_ref[...]
        o_ref[...] = (x_ref[...] - mean) * scale + b_ref[...]


def _pick_rows(M, C, cap_bytes=2 * 1024 * 1024):
    cap = max(8, min(512, (cap_bytes // (4 * C)) // 8 * 8))
    if M <= cap:
        return M, M
    for tm in range(cap, 7, -8):
        if M % tm == 0:
            return tm, M
    return cap, _round_up(M, cap)


def batchnorm(x2d, gamma, beta, eps=1e-5):
    """Training-mode batch norm (biased variance) over rows of (M, C)."""
    M, C = x2d.shape
    x2d = x2d.astype(jnp.float32)
    gamma = gamma.astype(jnp.float32)
    beta = beta.astype(jnp.float32)
    fold = C < 128 and 128 % C == 0 and M % (128 // C) == 0
    if fold:  # lane-dense layout: (M, 64) -> (M/2, 128), params duplicated
        f = 128 // C
        xv = x2d.reshape(M // f, C * f)
        gv = jnp.tile(gamma, f)
        bv = jnp.tile(beta, f)
    else:
        xv, gv, bv = x2d, gamma, beta
    Mv, Cv = xv.shape
    tm, Mp = _pick_rows(Mv, Cv)
    if Mp != Mv:  # zero rows do not perturb sum / sumsq (inv_m uses true M)
        xv = jnp.pad(xv, ((0, Mp - Mv), (0, 0)))
    out = pl.pallas_call(
        functools.partial(_bn_kernel, eps=eps, inv_m=1.0 / M, fold=fold),
        out_shape=jax.ShapeDtypeStruct((Mp, Cv), jnp.float32),
        grid_spec=pltpu.PrefetchScalarGridSpec(
            num_scalar_prefetch=0,
            grid=(2, Mp // tm),
            in_specs=[
                pl.BlockSpec((tm, Cv), lambda p, i: (i, 0)),
                pl.BlockSpec((1, Cv), lambda p, i: (0, 0)),
                pl.BlockSpec((1, Cv), lambda p, i: (0, 0)),
            ],
            # stays on block 0 during the stats pass (no garbage writeback),
            # walks the blocks during the normalize pass.
            out_specs=pl.BlockSpec((tm, Cv), lambda p, i: (p * i, 0)),
            scratch_shapes=[pltpu.VMEM((1, Cv), jnp.float32),
                            pltpu.VMEM((1, Cv), jnp.float32)],
        ),
        compiler_params=pltpu.CompilerParams(
            dimension_semantics=("arbitrary", "arbitrary"),
            vmem_limit_bytes=32 * 1024 * 1024),
    )(xv, gv.reshape(1, Cv), bv.reshape(1, Cv))
    if Mp != Mv:
        out = out[:Mv]
    if fold:
        out = out.reshape(M, C)
    return out


# ----------------------- ConvTranspose2d(k=4, s=2, p=1) ----------------------
# Output parity (r,s) of y[2i+r, 2j+s] uses kernel taps:
#   r=0: (kh=3, ih=i-1), (kh=1, ih=i);   r=1: (kh=2, ih=i), (kh=0, ih=i+1)
# (same for columns), i.e. a 2x2 window inside the 3x3 patch around (i,j).
_KH_OF_PARITY = ({0: 3, 1: 1}, {1: 2, 2: 0})  # [parity][patch_offset_idx] -> tap


def _prep_linear(w, b):
    """(K,N) f32 weight + (N,) bias -> bf16 weight / f32 bias, N padded to 128."""
    K, N = w.shape
    Np = _round_up(N, 128)
    wq = w.astype(jnp.bfloat16)
    bq = b.astype(jnp.float32)
    if Np != N:
        wq = jnp.pad(wq, ((0, 0), (0, Np - N)))
        bq = jnp.pad(bq, (0, Np - N))
    return wq, bq.reshape(1, Np)


def _prep_deconv(w, b):
    """PyTorch ConvTranspose2d weight (Cin,Cout,4,4) -> subpixel GEMM weight
    (9*Cin, pad128(4*Cout)) bf16 + bias (1, pad128(4*Cout)) f32.  K layout is
    (dh, dw, ci); N layout is (r, s, co)."""
    cin, cout = w.shape[0], w.shape[1]
    wb = jnp.zeros((3, 3, cin, 2, 2, cout), jnp.float32)
    for r in (0, 1):
        for s in (0, 1):
            for dhi, kh in _KH_OF_PARITY[r].items():
                for dwi, kw in _KH_OF_PARITY[s].items():
                    wb = wb.at[dhi, dwi, :, r, s, :].set(w[:, :, kh, kw])
    wb = wb.reshape(9 * cin, 4 * cout)
    bb = jnp.tile(b.astype(jnp.float32), 4)
    return _prep_linear(wb, bb)


def conv_transpose_subpixel(x_nhwc, w_big, b_big, cout, activation):
    """ConvTranspose2d(4,2,1) as one lane-dense subpixel GEMM.  Returns NHWC."""
    n, h, w, cin = x_nhwc.shape
    assert w_big.shape[0] == 9 * cin
    xb = x_nhwc.astype(jnp.bfloat16)
    xp = jnp.pad(xb, ((0, 0), (1, 1), (1, 1), (0, 0)))
    # TODO(synk): build the 3x3 halo patches inside the kernel (manual DMA) to
    # avoid materializing the 9*Cin-wide bf16 patch buffer in HBM.
    patches = [xp[:, dh:dh + h, dw:dw + w, :] for dh in range(3) for dw in range(3)]
    xcol = jnp.concatenate(patches, axis=-1).reshape(n * h * w, 9 * cin)
    y = matmul_bias_act(xcol, w_big, b_big, activation)     # (n*h*w, Np)
    if y.shape[1] != 4 * cout:
        y = y[:, :4 * cout]
    y = y.reshape(n, h, w, 2, 2, cout).transpose(0, 1, 3, 2, 4, 5)
    return y.reshape(n, 2 * h, 2 * w, cout)


def _conv_transpose_ref(x_nchw, w, b):
    """Plain-JAX reference for PyTorch ConvTranspose2d(k=4, s=2, p=1)."""
    y = jax.lax.conv_general_dilated(
        x_nchw, w[:, :, ::-1, ::-1],
        window_strides=(1, 1), padding=[(2, 2), (2, 2)],
        lhs_dilation=(2, 2), rhs_dilation=(1, 1),
        dimension_numbers=("NCHW", "IOHW", "NCHW"))
    return y + b.reshape(1, -1, 1, 1)


# ------------------------------- parameters ----------------------------------
_CONV_CHANNELS = ((128, 64), (64, 64), (64, 64), (64, 3))


def init_params(key, noise_dim=128):
    ks = jax.random.split(key, 12)
    s = 0.05
    p = {}
    p["fc1_w"] = s * jax.random.normal(ks[0], (noise_dim, 1024), jnp.float32)
    p["fc1_b"] = s * jax.random.normal(ks[1], (1024,), jnp.float32)
    p["bn1_g"] = 1.0 + 0.1 * jax.random.normal(ks[2], (1024,), jnp.float32)
    p["bn1_b"] = 0.1 * jax.random.normal(ks[3], (1024,), jnp.float32)
    p["fc2_w"] = s * jax.random.normal(ks[4], (1024, 6 * 6 * 128), jnp.float32)
    p["fc2_b"] = s * jax.random.normal(ks[5], (6 * 6 * 128,), jnp.float32)
    p["bn2_g"] = 1.0 + 0.1 * jax.random.normal(ks[6], (6 * 6 * 128,), jnp.float32)
    p["bn2_b"] = 0.1 * jax.random.normal(ks[7], (6 * 6 * 128,), jnp.float32)
    for i, (ci, co) in enumerate(_CONV_CHANNELS):
        k1, k2, k3, k4 = jax.random.split(ks[8 + i], 4)
        p[f"ct{i}_w"] = s * jax.random.normal(k1, (ci, co, 4, 4), jnp.float32)
        p[f"ct{i}_b"] = s * jax.random.normal(k2, (co,), jnp.float32)
        if i < 3:
            p[f"cbn{i}_g"] = 1.0 + 0.1 * jax.random.normal(k3, (co,), jnp.float32)
            p[f"cbn{i}_b"] = 0.1 * jax.random.normal(k4, (co,), jnp.float32)
    return p


def prepare_params(p):
    """One-time preprocessing: bf16 cast, lane padding, deconv subpixel packing
    (no per-step weight transforms inside the forward)."""
    pp = {}
    pp["fc1_w"], pp["fc1_b"] = _prep_linear(p["fc1_w"], p["fc1_b"])
    pp["fc2_w"], pp["fc2_b"] = _prep_linear(p["fc2_w"], p["fc2_b"])
    for name in ("bn1_g", "bn1_b", "bn2_g", "bn2_b"):
        pp[name] = p[name].astype(jnp.float32)
    for i in range(4):
        pp[f"ct{i}_w"], pp[f"ct{i}_b"] = _prep_deconv(p[f"ct{i}_w"], p[f"ct{i}_b"])
        if i < 3:
            pp[f"cbn{i}_g"] = p[f"cbn{i}_g"].astype(jnp.float32)
            pp[f"cbn{i}_b"] = p[f"cbn{i}_b"].astype(jnp.float32)
    return pp


# --------------------------------- forward -----------------------------------
def generator_forward(x, pp):
    n = x.shape[0]
    h = matmul_bias_act(x, pp["fc1_w"], pp["fc1_b"], "relu")
    h = batchnorm(h, pp["bn1_g"], pp["bn1_b"])
    h = matmul_bias_act(h, pp["fc2_w"], pp["fc2_b"], "relu")
    h = batchnorm(h, pp["bn2_g"], pp["bn2_b"])
    # PyTorch view(N,128,6,6) is NCHW; convert to NHWC for the conv stack.
    h = h.reshape(n, 128, 6, 6).transpose(0, 2, 3, 1)
    for i, (_, cout) in enumerate(_CONV_CHANNELS):
        act = "tanh" if i == 3 else "relu"
        h = conv_transpose_subpixel(h, pp[f"ct{i}_w"], pp[f"ct{i}_b"], cout, act)
        if i < 3:
            nb, hh, ww, cc = h.shape
            h = batchnorm(h.reshape(nb * hh * ww, cc),
                          pp[f"cbn{i}_g"], pp[f"cbn{i}_b"]).reshape(nb, hh, ww, cc)
    # back to NCHW to match the PyTorch output convention: (N, 3, 96, 96)
    return h.transpose(0, 3, 1, 2)


if __name__ == "__main__":
    key = jax.random.PRNGKey(0)
    kx, kp = jax.random.split(key)
    batch, noise_dim = 2, 128
    x = jax.random.normal(kx, (batch, noise_dim), jnp.float32)
    raw_params = init_params(kp, noise_dim)
    params = prepare_params(raw_params)

    # --- GEMM kernel vs f32 reference (bf16 operands -> loose tolerance) ---
    xs = jax.random.normal(jax.random.PRNGKey(1), (7, 130), jnp.float32)
    ws = jax.random.normal(jax.random.PRNGKey(2), (130, 70), jnp.float32)
    bs = jax.random.normal(jax.random.PRNGKey(3), (70,), jnp.float32)
    wp, bp = _prep_linear(ws, bs)
    got = matmul_bias_act(xs, wp, bp, "relu")[:, :70]
    ref = jnp.maximum(xs @ ws + bs, 0.0)
    rel = jnp.linalg.norm(got - ref) / (jnp.linalg.norm(ref) + 1e-6)
    assert float(rel) < 3e-2, float(rel)

    # --- batchnorm (fold path, C=64) ---
    xb = jax.random.normal(jax.random.PRNGKey(4), (32, 64), jnp.float32)
    gb = jax.random.normal(jax.random.PRNGKey(5), (64,), jnp.float32)
    bb = jax.random.normal(jax.random.PRNGKey(6), (64,), jnp.float32)
    got_bn = batchnorm(xb, gb, bb)
    mu = xb.mean(0, keepdims=True)
    va = ((xb - mu) ** 2).mean(0, keepdims=True)
    ref_bn = (xb - mu) / jnp.sqrt(va + 1e-5) * gb + bb
    assert jnp.allclose(got_bn, ref_bn, atol=1e-3, rtol=1e-3)

    # --- batchnorm (wide path, C=256) ---
    xw = jax.random.normal(jax.random.PRNGKey(7), (10, 256), jnp.float32)
    gw = jax.random.normal(jax.random.PRNGKey(8), (256,), jnp.float32)
    bw = jax.random.normal(jax.random.PRNGKey(9), (256,), jnp.float32)
    got_bn2 = batchnorm(xw, gw, bw)
    mu2 = xw.mean(0, keepdims=True)
    va2 = ((xw - mu2) ** 2).mean(0, keepdims=True)
    ref_bn2 = (xw - mu2) / jnp.sqrt(va2 + 1e-5) * gw + bw
    assert jnp.allclose(got_bn2, ref_bn2, atol=1e-3, rtol=1e-3)

    # --- ConvTranspose2d(4,2,1) subpixel path vs lax reference ---
    wct = 0.05 * jax.random.normal(jax.random.PRNGKey(10), (8, 5, 4, 4), jnp.float32)
    bct = 0.05 * jax.random.normal(jax.random.PRNGKey(11), (5,), jnp.float32)
    xct = jax.random.normal(jax.random.PRNGKey(12), (2, 5, 5, 8), jnp.float32)  # NHWC
    wbig, bbig = _prep_deconv(wct, bct)
    got_ct = conv_transpose_subpixel(xct, wbig, bbig, 5, "none")
    ref_ct = _conv_transpose_ref(xct.transpose(0, 3, 1, 2), wct, bct).transpose(0, 2, 3, 1)
    relc = jnp.linalg.norm(got_ct - ref_ct) / (jnp.linalg.norm(ref_ct) + 1e-6)
    assert float(relc) < 3e-2, float(relc)

    # --- full forward ---
    fwd = jax.jit(generator_forward)
    out = jax.block_until_ready(fwd(x, params))

    assert out.shape == (batch, 3, 96, 96), out.shape
    assert bool(jnp.all(jnp.isfinite(out)))
    assert bool(jnp.all(jnp.abs(out) <= 1.0 + 1e-6))  # tanh output range
    print("KERNEL_OK")
</pallas_src>

<mosaic_0001>
module attributes {stable_mosaic.version = 11 : i64} {
  func.func @_matmul_bias_act_kernel(%arg0: i32, %arg1: i32, %arg2: memref<7x130xbf16, #tpu.memory_space<vmem>>, %arg3: memref<130x128xbf16, #tpu.memory_space<vmem>>, %arg4: memref<1x128xf32, #tpu.memory_space<vmem>>, %arg5: memref<7x128xf32, #tpu.memory_space<vmem>>) attributes {dimension_semantics = [#tpu.dimension_semantics<parallel>, #tpu.dimension_semantics<parallel>], iteration_bounds = array<i64: 1, 1>, scalar_prefetch = 0 : i64, scratch_operands = 0 : i64, tpu.core_type = #tpu.core_type<tc>, window_params = [{transform_indices = @transform_0, window_bounds = array<i64: 7, 130>}, {transform_indices = @transform_1, window_bounds = array<i64: 130, 128>}, {transform_indices = @transform_2, window_bounds = array<i64: 1, 128>}, {transform_indices = @transform_3, window_bounds = array<i64: 7, 128>}]} {
    %c0 = arith.constant 0 : index
    %c0_0 = arith.constant 0 : index
    %0 = vector.load %arg2[%c0, %c0_0] : memref<7x130xbf16, #tpu.memory_space<vmem>>, vector<7x130xbf16>
    %c0_1 = arith.constant 0 : index
    %c0_2 = arith.constant 0 : index
    %1 = vector.load %arg3[%c0_1, %c0_2] : memref<130x128xbf16, #tpu.memory_space<vmem>>, vector<130x128xbf16>
    %cst = arith.constant dense<0.000000e+00> : vector<7x128xf32>
    %2 = tpu.matmul %0, %1, %cst {dimension_numbers = #tpu.dot_dimension_numbers<[1], [0], [0], [1], [0, 0, 1, 1], [], []>} : vector<7x130xbf16>, vector<130x128xbf16>, vector<7x128xf32> -> vector<7x128xf32>
    %c0_3 = arith.constant 0 : index
    %c0_4 = arith.constant 0 : index
    %3 = vector.load %arg4[%c0_3, %c0_4] : memref<1x128xf32, #tpu.memory_space<vmem>>, vector<1x128xf32>
    %4 = vector.broadcast %3 : vector<1x128xf32> to vector<7x128xf32>
    %5 = arith.addf %2, %4 : vector<7x128xf32>
    %cst_5 = arith.constant 0.000000e+00 : f32
    %6 = vector.broadcast %cst_5 : f32 to vector<7x128xf32>
    %7 = arith.maximumf %5, %6 : vector<7x128xf32>
    %c0_6 = arith.constant 0 : index
    %c0_7 = arith.constant 0 : index
    %8 = vector.load %arg5[%c0_6, %c0_7] : memref<7x128xf32, #tpu.memory_space<vmem>>, vector<7x128xf32>
    tpu.vector_store %arg5[%c0_6, %c0_7], %7 {strides = array<i32>} : memref<7x128xf32, #tpu.memory_space<vmem>>, vector<7x128xf32>,
    return
  }
  func.func @transform_0(%arg0: i32, %arg1: i32) -> (i32, i32) {
    %c0_i32 = arith.constant 0 : i32
    %c0_i32_0 = arith.constant 0 : i32
    return %arg0, %c0_i32 : i32, i32
  }
  func.func @transform_1(%arg0: i32, %arg1: i32) -> (i32, i32) {
    %c0_i32 = arith.constant 0 : i32
    %c0_i32_0 = arith.constant 0 : i32
    return %c0_i32, %arg1 : i32, i32
  }
  func.func @transform_2(%arg0: i32, %arg1: i32) -> (i32, i32) {
    %c0_i32 = arith.constant 0 : i32
    %c0_i32_0 = arith.constant 0 : i32
    return %c0_i32, %arg1 : i32, i32
  }
  func.func @transform_3(%arg0: i32, %arg1: i32) -> (i32, i32) {
    %c0_i32 = arith.constant 0 : i32
    return %arg0, %arg1 : i32, i32
  }
}

</mosaic_0001>

<llo_original>
// kernel: tpu_custom_call.1
$region0: #{tpu_custom_call.1}
  #allocation0 [shape = 'u32[]', space=smem, size = 0x4, offset = 0x4, fixed_abs, tag = 'smem constant byte address 0x4 - core index']
  #allocation1 [shape = 'u32[72,128]{1,0:T(1,128)}', space=vmem, size = 0x9000, scoped, tag = 'internal scratch']
  %s0 = inlined_call_operand.hbm [shape: bf16[7,130], index: 0, kind: input, shape index: {}]
  %s1 = inlined_call_operand.hbm [shape: bf16[130,128], index: 1, kind: input, shape index: {}]
  %s2 = inlined_call_operand.vmem [shape: f32[1,128], index: 2, kind: input, shape index: {}]
  %s3 = inlined_call_operand.hbm [shape: f32[7,128], index: 3, kind: output, shape index: {}]
  %s4 = sld [smem:[#allocation0]]
  $region30: #{tpu_custom_call.1} parent=0
    _
  %s6 = ssub.s32 1, %s4
  %s7 = scalar_select 0, %s6, %s4
  $region1: #{tpu_custom_call.1} parent=0
    #allocation2 [shape = 'u8[4096]{0}', space=vmem, size = 0x1000, scoped, tag = 'input window, operand 0, single buffered']
    #allocation3 [shape = 's32[1]{0}', space=sflag, size = 0x4, scoped, tag = 'scoped memory for tpu_custom_call.1']
    #allocation4 [shape = 's32[1]{0}', space=sflag, size = 0x4, scoped, tag = 'scoped memory for tpu_custom_call.1']
    #allocation5 [shape = 'u8[34816]{0}', space=vmem, size = 0x8800, scoped, tag = 'input window, operand 1, single buffered']
    #allocation6 [shape = 's32[1]{0}', space=sflag, size = 0x4, scoped, tag = 'scoped memory for tpu_custom_call.1']
    #allocation7 [shape = 'u8[4096]{0}', space=vmem, size = 0x1000, scoped, tag = 'output window, operand 0, single buffered']
    %8 = vsyncpa [#allocation3], 0
    %9 = vsyncpa [#allocation6], 0
    %10 = vsyncpa [#allocation4], 0
    // Predicated region
    $region2: #{tpu_custom_call.1} parent=1 // pred_check
      _
    $region3: #{tpu_custom_call.1} parent=1 // pred_check_branch
      %12 = sbr.rel (0) target = $region5
    $region4: #{tpu_custom_call.1} parent=1 // pred_region
      %14 = vsyncadd [#allocation3], 0
      %s16 = sshll.u32 %s0, 4
      %s17 = int_to_ptr.hbm [resolvable:$true] %s16
      %s18 = sshll.u32 [#allocation2], 4
      %s19 = int_to_ptr.vmem [resolvable:$true] %s18
      %21 = dma.hbm_to_vmem [thread:$0]  %s17, 128, %s19, [#allocation3]
    $region5: #{tpu_custom_call.1} parent=1 // pred_fallthru
      _
    // Predicated region
    $region6: #{tpu_custom_call.1} parent=1 // pred_check
      _
    $region7: #{tpu_custom_call.1} parent=1 // pred_check_branch
      %23 = sbr.rel (0) target = $region9
    $region8: #{tpu_custom_call.1} parent=1 // pred_region
      %25 = vsyncadd [#allocation6], 0
      %s26 = sshll.u32 %s1, 4
      %s27 = int_to_ptr.hbm [resolvable:$true] %s26
      %s28 = sshll.u32 [#allocation5], 4
      %s29 = int_to_ptr.vmem [resolvable:$true] %s28
      %34 = dma.hbm_to_vmem [thread:$0]  %s27, 1088, %s29, [#allocation6], 64, 64, 4
    $region9: #{tpu_custom_call.1} parent=1 // pred_fallthru
      _
    // Predicated region
    $region10: #{tpu_custom_call.1} parent=1 // pred_check
      _
    $region11: #{tpu_custom_call.1} parent=1 // pred_check_branch
      %36 = sbr.rel (0) target = $region13
    $region12: #{tpu_custom_call.1} parent=1 // pred_region
      _
    $region13: #{tpu_custom_call.1} parent=1 // pred_fallthru
      _
    // Predicated region
    $region14: #{tpu_custom_call.1} parent=1 // pred_check
      _
    $region15: #{tpu_custom_call.1} parent=1 // pred_check_branch
      %38 = sbr.rel (0) target = $region17
    $region16: #{tpu_custom_call.1} parent=1 // pred_region
      %40 = dma.done [#allocation3], 128
    $region17: #{tpu_custom_call.1} parent=1 // pred_fallthru
      _
    // Predicated region
    $region18: #{tpu_custom_call.1} parent=1 // pred_check
      _
    $region19: #{tpu_custom_call.1} parent=1 // pred_check_branch
      %42 = sbr.rel (0) target = $region21
    $region20: #{tpu_custom_call.1} parent=1 // pred_region
      %44 = dma.done [#allocation6], 1088
    $region21: #{tpu_custom_call.1} parent=1 // pred_fallthru
      _
    %v46 = vld [vmem:[#allocation2] sm:$0xff]
    %v47 = vld [vmem:[#allocation5] sm:$0xf]
    %v48 = vld [vmem:[#allocation5 + $0x4] sm:$0xf]
    %v49 = vld [vmem:[#allocation5 + $0x8] sm:$0xf]
    %v50 = vld [vmem:[#allocation5 + $0xc] sm:$0xf]
    %v51 = vld [vmem:[#allocation5 + $0x10] sm:$0xf]
    %v52 = vld [vmem:[#allocation5 + $0x14] sm:$0xf]
    %v53 = vld [vmem:[#allocation5 + $0x18] sm:$0xf]
    %v54 = vld [vmem:[#allocation5 + $0x1c] sm:$0xf]
    %v55 = vld [vmem:[#allocation5 + $0x20] sm:$0xf]
    %v56 = vld [vmem:[#allocation5 + $0x24] sm:$0xf]
    %v57 = vld [vmem:[#allocation5 + $0x28] sm:$0xf]
    %v58 = vld [vmem:[#allocation5 + $0x2c] sm:$0xf]
    %v59 = vld [vmem:[#allocation5 + $0x30] sm:$0xf]
    %v60 = vld [vmem:[#allocation5 + $0x34] sm:$0xf]
    %v61 = vld [vmem:[#allocation5 + $0x38] sm:$0xf]
    %v62 = vld [vmem:[#allocation5 + $0x3c] sm:$0xf]
    %v63 = vld [vmem:[#allocation5 + $0x40] sm:$0x1]
    %v64 = vld [vmem:[%s2] sm:$0x1]
    %v66 = vperm.slane %v64, 0
    %v69 = vunpack.c.l.b16 %v46
    %v70 = vunpack.c.h.b16 %v46
    %v71 = vpack.c.b16 %v69, %v69
    %v72 = vpack.c.b16 %v70, %v70
    %v91 = vunpack.c.l.b16 %v47
    %v92 = vunpack.c.l.b16 %v48
    %v93 = vunpack.c.l.b16 %v49
    %v94 = vunpack.c.l.b16 %v50
    %v95 = vunpack.c.l.b16 %v51
    %v96 = vunpack.c.l.b16 %v52
    %v97 = vunpack.c.l.b16 %v53
    %v98 = vunpack.c.l.b16 %v54
    %v99 = vunpack.c.l.b16 %v55
    %v100 = vunpack.c.l.b16 %v56
    %v101 = vunpack.c.l.b16 %v57
    %v102 = vunpack.c.l.b16 %v58
    %v103 = vunpack.c.l.b16 %v59
    %v104 = vunpack.c.l.b16 %v60
    %v105 = vunpack.c.l.b16 %v61
    %v106 = vunpack.c.l.b16 %v62
    %v107 = vunpack.c.l.b16 %v63
    %v108 = vpack.c.b16 %v92, %v91
    %v109 = vpack.c.b16 %v94, %v93
    %v110 = vpack.c.b16 %v96, %v95
    %v111 = vpack.c.b16 %v98, %v97
    %v112 = vpack.c.b16 %v100, %v99
    %v113 = vpack.c.b16 %v102, %v101
    %v114 = vpack.c.b16 %v104, %v103
    %v115 = vpack.c.b16 %v106, %v105
    %v116 = vpack.c.b16 %v107, %v107
    %vm125 = vcmask 15360
    %v127 = vsel %vm125, %v72, 0
    %vm129 = vcmask 1040384
    %v131 = vsel %vm129, %v116, 0
    %133 = vmatpush.bf16.msra.mxu0 %v115
    %134 = vmatpush.bf16.msra.mxu0 %v114
    %135 = vmatpush.bf16.msra.mxu0 %v113
    %136 = vmatpush.bf16.msra.mxu0 %v112
    %137 = vmatpush.bf16.msra.mxu0 %v111
    %138 = vmatpush.bf16.msra.mxu0 %v110
    %139 = vmatpush.bf16.msra.mxu0 %v109
    %140 = vmatpush.bf16.msra.mxu0 %v108
    %141 = vmatmul.bf16.gmra.mxu0 %v71
    %v142 = vpop.f32.mrf.mxu0
    %v143 = vadd.f32 %v66, %v142
    %v144 = vpop.f32.mrf.mxu0
    %145 = vdwg.mxu0
    %146 = vmatpush.bf16.msra.mxu0 0
    %147 = vmatpush.bf16.msra.mxu0 0
    %148 = vmatpush.bf16.msra.mxu0 0
    %149 = vmatpush.bf16.msra.mxu0 0
    %150 = vmatpush.bf16.msra.mxu0 0
    %151 = vmatpush.bf16.msra.mxu0 0
    %152 = vmatpush.bf16.msra.mxu0 0
    %153 = vmatpush.bf16.msra.mxu0 %v131
    %154 = vmatmul.bf16.gmra.mxu0 %v127
    %v155 = vpop.f32.mrf.mxu0
    %v156 = vadd.f32 %v143, %v155
    %v157 = vpop.f32.mrf.mxu0
    %158 = vdwg.mxu0
    %v159 = vmax.f32 %v156, 0.0
    %160 = vst [vmem:[#allocation7] sm:$0x7f] %v159
    // Predicated region
    $region22: #{tpu_custom_call.1} parent=1 // pred_check
      _
    $region23: #{tpu_custom_call.1} parent=1 // pred_check_branch
      %162 = sbr.rel (0) target = $region25
    $region24: #{tpu_custom_call.1} parent=1 // pred_region
      %164 = vsyncadd [#allocation4], 0
      %s166 = sshll.u32 [#allocation7], 4
      %s167 = int_to_ptr.vmem [resolvable:$true] %s166
      %s168 = sshll.u32 %s3, 4
      %s169 = int_to_ptr.hbm [resolvable:$true] %s168
      %171 = dma.vmem_to_hbm [thread:$0]  %s167, 128, %s169, [#allocation4]
    $region25: #{tpu_custom_call.1} parent=1 // pred_fallthru
      _
    // Predicated region
    $region26: #{tpu_custom_call.1} parent=1 // pred_check
      _
    $region27: #{tpu_custom_call.1} parent=1 // pred_check_branch
      %173 = sbr.rel (0) target = $region29
    $region28: #{tpu_custom_call.1} parent=1 // pred_region
      %175 = dma.done [#allocation4], 128
    $region29: #{tpu_custom_call.1} parent=1 // pred_fallthru
      _
    %176 = vsyncpa [#allocation3], 1
    %177 = vsyncpa [#allocation6], 1
    %178 = vsyncpa [#allocation4], 1

</llo_original>
